<compile_context>
chip_gen: v6e
topology: v6e:2x2x1
jax: 0.10.0
libtpu: 0.0.40
codegen_flags: <defaults>
</compile_context>

<pallas_src>
import math
import jax
import jax.numpy as jnp
from jax import lax
from jax.experimental import pallas as pl
from jax.experimental.pallas import tpu as pltpu

INPUT_SIZE = 2
HIDDEN_SIZE = 64
OUTPUT_SIZE = 2


def _rnn_kernel(x_ref, w_ih_ref, w_hh_ref, b_ref, w_fc_ref, b_fc_ref, o_ref):
    """Single-invocation kernel: full RNN unroll + final Linear.

    x_ref   : (S, B, I)  time-major input (B padded to a multiple of 8)
    w_ih_ref: (I, H)     RNN input weights, pre-transposed
    w_hh_ref: (H, H)     RNN recurrent weights, pre-transposed
    b_ref   : (1, H)     b_ih + b_hh (combined)
    w_fc_ref: (H, O)     fc weights, pre-transposed
    b_fc_ref: (1, O)
    o_ref   : (B, O)     fc applied to the last hidden state
    """
    S, B, I = x_ref.shape
    H = w_hh_ref.shape[1]

    x = x_ref[...]                      # (S, B, I)
    w_ih = w_ih_ref[...]                # (I, H)
    w_hh = w_hh_ref[...]                # (H, H)

    # ---- hoisted input projection + bias: pre[t] = x[t] @ W_ih + b ---------
    # I is tiny (2), so do it on the VPU as broadcast multiply-adds instead of
    # an under-utilized K=2 MXU matmul; bias broadcasts once here, not per step.
    pre_all = x[:, :, 0:1] * w_ih[0:1, :] + b_ref[...]          # (S, B, H)
    for i in range(1, I):
        pre_all = pre_all + x[:, :, i:i + 1] * w_ih[i:i + 1, :]

    # ---- serial recurrence, fully unrolled, h carried in vregs -------------
    h = jnp.zeros((B, H), jnp.float32)
    for t in range(S):
        h = jnp.tanh(pre_all[t]
                     + jnp.dot(h, w_hh, preferred_element_type=jnp.float32))
    # TODO(synk): on v5e, W_hh could be held resident in MXU weight registers
    # (pltpu.matmul_push_rhs / matmul_acc_lhs / matmul_pop) to avoid re-staging
    # the 64x64 weights every step of the serial chain.

    # ---- fc(out[:, -1, :]) == fc(h_T) ---------------------------------------
    o_ref[...] = (jnp.dot(h, w_fc_ref[...], preferred_element_type=jnp.float32)
                  + b_fc_ref[...])


def rnn_model_forward(x, params):
    """x: (B, S, I) batch-first, float32. Returns (B, O)."""
    B, S, I = x.shape
    H = params["w_hh"].shape[0]
    O = params["w_fc_out"].shape[0]

    # Pad batch to a sublane-friendly multiple of 8 (min 8). Padded rows see
    # zero inputs and are sliced away below, so semantics are unchanged.
    B_pad = max(8, ((B + 7) // 8) * 8)

    # Glue in plain JAX: time-major transpose + weight transposes.
    x_tm = jnp.transpose(x, (1, 0, 2)).astype(jnp.float32)       # (S, B, I)
    if B_pad != B:
        x_tm = jnp.pad(x_tm, ((0, 0), (0, B_pad - B), (0, 0)))
    w_ih_t = params["w_ih"].T.astype(jnp.float32)                # (I, H)
    w_hh_t = params["w_hh"].T.astype(jnp.float32)                # (H, H)
    b_rnn = (params["b_ih"] + params["b_hh"]).reshape(1, H).astype(jnp.float32)
    w_fc_t = params["w_fc_out"].T.astype(jnp.float32)            # (H, O)
    b_fc = params["b_fc_out"].reshape(1, O).astype(jnp.float32)

    vmem = pl.BlockSpec(memory_space=pltpu.MemorySpace.VMEM)

    flops = 2 * S * B_pad * H * (I + H) + 2 * B_pad * H * O
    bytes_accessed = 4 * (S * B_pad * I + I * H + H * H + H
                          + H * O + O + B_pad * O)
    cost = pl.CostEstimate(flops=flops,
                           transcendentals=S * B_pad * H,
                           bytes_accessed=bytes_accessed)

    out = pl.pallas_call(
        _rnn_kernel,
        out_shape=jax.ShapeDtypeStruct((B_pad, O), jnp.float32),
        in_specs=[vmem] * 6,
        out_specs=vmem,
        cost_estimate=cost,
    )(x_tm, w_ih_t, w_hh_t, b_rnn, w_fc_t, b_fc)

    return out[:B]


def init_params(key, input_size, hidden_size, output_size):
    """Deterministic init mimicking PyTorch's U(-1/sqrt(H), 1/sqrt(H))."""
    k = jax.random.split(key, 6)
    s_rnn = 1.0 / math.sqrt(hidden_size)
    s_fc = 1.0 / math.sqrt(hidden_size)
    u = lambda kk, shape, s: jax.random.uniform(
        kk, shape, minval=-s, maxval=s, dtype=jnp.float32)
    return {
        "w_ih": u(k[0], (hidden_size, input_size), s_rnn),
        "w_hh": u(k[1], (hidden_size, hidden_size), s_rnn),
        "b_ih": u(k[2], (hidden_size,), s_rnn),
        "b_hh": u(k[3], (hidden_size,), s_rnn),
        "w_fc_out": u(k[4], (output_size, hidden_size), s_fc),
        "b_fc_out": u(k[5], (output_size,), s_fc),
    }


def reference_forward(x, params):
    """Pure-JAX reference matching PyTorch nn.RNN(batch_first=True) + Linear."""
    def step(h, x_t):
        h_new = jnp.tanh(x_t @ params["w_ih"].T + params["b_ih"]
                         + h @ params["w_hh"].T + params["b_hh"])
        return h_new, None

    B, S, I = x.shape
    h0 = jnp.zeros((B, params["w_hh"].shape[0]), jnp.float32)
    x_tm = jnp.transpose(x, (1, 0, 2))
    h_last, _ = lax.scan(step, h0, x_tm)
    return h_last @ params["w_fc_out"].T + params["b_fc_out"]


if __name__ == "__main__":
    key = jax.random.PRNGKey(0)
    k_x, k_p = jax.random.split(key)

    B, S = 4, 8
    x = jax.random.normal(k_x, (B, S, INPUT_SIZE), dtype=jnp.float32)
    params = init_params(k_p, INPUT_SIZE, HIDDEN_SIZE, OUTPUT_SIZE)

    out = rnn_model_forward(x, params)
    out = jax.block_until_ready(out)

    ref = reference_forward(x, params)
    assert out.shape == (B, OUTPUT_SIZE)
    assert jnp.allclose(out, ref, atol=1e-5, rtol=1e-5), "mismatch vs reference"

    print("KERNEL_OK")
</pallas_src>

<mosaic_0001>
module attributes {stable_mosaic.version = 11 : i64} {
  func.func @_rnn_kernel(%arg0: memref<8x8x2xf32, #tpu.memory_space<vmem>>, %arg1: memref<2x64xf32, #tpu.memory_space<vmem>>, %arg2: memref<64x64xf32, #tpu.memory_space<vmem>>, %arg3: memref<1x64xf32, #tpu.memory_space<vmem>>, %arg4: memref<64x2xf32, #tpu.memory_space<vmem>>, %arg5: memref<1x2xf32, #tpu.memory_space<vmem>>, %arg6: memref<8x2xf32, #tpu.memory_space<vmem>>) attributes {dimension_semantics = [], scalar_prefetch = 0 : i64, scratch_operands = 0 : i64, tpu.core_type = #tpu.core_type<tc>} {
    %c0 = arith.constant 0 : index
    %c0_0 = arith.constant 0 : index
    %c0_1 = arith.constant 0 : index
    %0 = vector.load %arg0[%c0, %c0_0, %c0_1] : memref<8x8x2xf32, #tpu.memory_space<vmem>>, vector<8x8x2xf32>
    %c0_2 = arith.constant 0 : index
    %c0_3 = arith.constant 0 : index
    %1 = vector.load %arg1[%c0_2, %c0_3] : memref<2x64xf32, #tpu.memory_space<vmem>>, vector<2x64xf32>
    %c0_4 = arith.constant 0 : index
    %c0_5 = arith.constant 0 : index
    %2 = vector.load %arg2[%c0_4, %c0_5] : memref<64x64xf32, #tpu.memory_space<vmem>>, vector<64x64xf32>
    %3 = vector.extract_strided_slice %0 {offsets = [0, 0, 0], sizes = [8, 8, 1], strides = [1, 1, 1]} : vector<8x8x2xf32> to vector<8x8x1xf32>
    %4 = vector.extract_strided_slice %1 {offsets = [0, 0], sizes = [1, 64], strides = [1, 1]} : vector<2x64xf32> to vector<1x64xf32>
    %5 = vector.shape_cast %4 : vector<1x64xf32> to vector<1x1x64xf32>
    %6 = vector.broadcast %3 : vector<8x8x1xf32> to vector<8x8x64xf32>
    %7 = vector.broadcast %5 : vector<1x1x64xf32> to vector<8x8x64xf32>
    %8 = arith.mulf %6, %7 : vector<8x8x64xf32>
    %c0_6 = arith.constant 0 : index
    %c0_7 = arith.constant 0 : index
    %9 = vector.load %arg3[%c0_6, %c0_7] : memref<1x64xf32, #tpu.memory_space<vmem>>, vector<1x64xf32>
    %10 = vector.shape_cast %9 : vector<1x64xf32> to vector<1x1x64xf32>
    %11 = vector.broadcast %10 : vector<1x1x64xf32> to vector<8x8x64xf32>
    %12 = arith.addf %8, %11 : vector<8x8x64xf32>
    %13 = vector.extract_strided_slice %0 {offsets = [0, 0, 1], sizes = [8, 8, 1], strides = [1, 1, 1]} : vector<8x8x2xf32> to vector<8x8x1xf32>
    %14 = vector.extract_strided_slice %1 {offsets = [1, 0], sizes = [1, 64], strides = [1, 1]} : vector<2x64xf32> to vector<1x64xf32>
    %15 = vector.shape_cast %14 : vector<1x64xf32> to vector<1x1x64xf32>
    %16 = vector.broadcast %13 : vector<8x8x1xf32> to vector<8x8x64xf32>
    %17 = vector.broadcast %15 : vector<1x1x64xf32> to vector<8x8x64xf32>
    %18 = arith.mulf %16, %17 : vector<8x8x64xf32>
    %19 = arith.addf %12, %18 : vector<8x8x64xf32>
    %cst = arith.constant 0.000000e+00 : f32
    %20 = vector.broadcast %cst : f32 to vector<8x64xf32>
    %21 = vector.extract_strided_slice %19 {offsets = [0, 0, 0], sizes = [1, 8, 64], strides = [1, 1, 1]} : vector<8x8x64xf32> to vector<1x8x64xf32>
    %22 = vector.shape_cast %21 : vector<1x8x64xf32> to vector<8x64xf32>
    %cst_8 = arith.constant dense<0.000000e+00> : vector<8x64xf32>
    %23 = tpu.matmul %20, %2, %cst_8 {dimension_numbers = #tpu.dot_dimension_numbers<[1], [0], [0], [1], [0, 0, 1, 1], [], []>} : vector<8x64xf32>, vector<64x64xf32>, vector<8x64xf32> -> vector<8x64xf32>
    %24 = arith.addf %22, %23 : vector<8x64xf32>
    %25 = math.tanh %24 : vector<8x64xf32>
    %26 = vector.extract_strided_slice %19 {offsets = [1, 0, 0], sizes = [1, 8, 64], strides = [1, 1, 1]} : vector<8x8x64xf32> to vector<1x8x64xf32>
    %27 = vector.shape_cast %26 : vector<1x8x64xf32> to vector<8x64xf32>
    %cst_9 = arith.constant dense<0.000000e+00> : vector<8x64xf32>
    %28 = tpu.matmul %25, %2, %cst_9 {dimension_numbers = #tpu.dot_dimension_numbers<[1], [0], [0], [1], [0, 0, 1, 1], [], []>} : vector<8x64xf32>, vector<64x64xf32>, vector<8x64xf32> -> vector<8x64xf32>
    %29 = arith.addf %27, %28 : vector<8x64xf32>
    %30 = math.tanh %29 : vector<8x64xf32>
    %31 = vector.extract_strided_slice %19 {offsets = [2, 0, 0], sizes = [1, 8, 64], strides = [1, 1, 1]} : vector<8x8x64xf32> to vector<1x8x64xf32>
    %32 = vector.shape_cast %31 : vector<1x8x64xf32> to vector<8x64xf32>
    %cst_10 = arith.constant dense<0.000000e+00> : vector<8x64xf32>
    %33 = tpu.matmul %30, %2, %cst_10 {dimension_numbers = #tpu.dot_dimension_numbers<[1], [0], [0], [1], [0, 0, 1, 1], [], []>} : vector<8x64xf32>, vector<64x64xf32>, vector<8x64xf32> -> vector<8x64xf32>
    %34 = arith.addf %32, %33 : vector<8x64xf32>
    %35 = math.tanh %34 : vector<8x64xf32>
    %36 = vector.extract_strided_slice %19 {offsets = [3, 0, 0], sizes = [1, 8, 64], strides = [1, 1, 1]} : vector<8x8x64xf32> to vector<1x8x64xf32>
    %37 = vector.shape_cast %36 : vector<1x8x64xf32> to vector<8x64xf32>
    %cst_11 = arith.constant dense<0.000000e+00> : vector<8x64xf32>
    %38 = tpu.matmul %35, %2, %cst_11 {dimension_numbers = #tpu.dot_dimension_numbers<[1], [0], [0], [1], [0, 0, 1, 1], [], []>} : vector<8x64xf32>, vector<64x64xf32>, vector<8x64xf32> -> vector<8x64xf32>
    %39 = arith.addf %37, %38 : vector<8x64xf32>
    %40 = math.tanh %39 : vector<8x64xf32>
    %41 = vector.extract_strided_slice %19 {offsets = [4, 0, 0], sizes = [1, 8, 64], strides = [1, 1, 1]} : vector<8x8x64xf32> to vector<1x8x64xf32>
    %42 = vector.shape_cast %41 : vector<1x8x64xf32> to vector<8x64xf32>
    %cst_12 = arith.constant dense<0.000000e+00> : vector<8x64xf32>
    %43 = tpu.matmul %40, %2, %cst_12 {dimension_numbers = #tpu.dot_dimension_numbers<[1], [0], [0], [1], [0, 0, 1, 1], [], []>} : vector<8x64xf32>, vector<64x64xf32>, vector<8x64xf32> -> vector<8x64xf32>
    %44 = arith.addf %42, %43 : vector<8x64xf32>
    %45 = math.tanh %44 : vector<8x64xf32>
    %46 = vector.extract_strided_slice %19 {offsets = [5, 0, 0], sizes = [1, 8, 64], strides = [1, 1, 1]} : vector<8x8x64xf32> to vector<1x8x64xf32>
    %47 = vector.shape_cast %46 : vector<1x8x64xf32> to vector<8x64xf32>
    %cst_13 = arith.constant dense<0.000000e+00> : vector<8x64xf32>
    %48 = tpu.matmul %45, %2, %cst_13 {dimension_numbers = #tpu.dot_dimension_numbers<[1], [0], [0], [1], [0, 0, 1, 1], [], []>} : vector<8x64xf32>, vector<64x64xf32>, vector<8x64xf32> -> vector<8x64xf32>
    %49 = arith.addf %47, %48 : vector<8x64xf32>
    %50 = math.tanh %49 : vector<8x64xf32>
    %51 = vector.extract_strided_slice %19 {offsets = [6, 0, 0], sizes = [1, 8, 64], strides = [1, 1, 1]} : vector<8x8x64xf32> to vector<1x8x64xf32>
    %52 = vector.shape_cast %51 : vector<1x8x64xf32> to vector<8x64xf32>
    %cst_14 = arith.constant dense<0.000000e+00> : vector<8x64xf32>
    %53 = tpu.matmul %50, %2, %cst_14 {dimension_numbers = #tpu.dot_dimension_numbers<[1], [0], [0], [1], [0, 0, 1, 1], [], []>} : vector<8x64xf32>, vector<64x64xf32>, vector<8x64xf32> -> vector<8x64xf32>
    %54 = arith.addf %52, %53 : vector<8x64xf32>
    %55 = math.tanh %54 : vector<8x64xf32>
    %56 = vector.extract_strided_slice %19 {offsets = [7, 0, 0], sizes = [1, 8, 64], strides = [1, 1, 1]} : vector<8x8x64xf32> to vector<1x8x64xf32>
    %57 = vector.shape_cast %56 : vector<1x8x64xf32> to vector<8x64xf32>
    %cst_15 = arith.constant dense<0.000000e+00> : vector<8x64xf32>
    %58 = tpu.matmul %55, %2, %cst_15 {dimension_numbers = #tpu.dot_dimension_numbers<[1], [0], [0], [1], [0, 0, 1, 1], [], []>} : vector<8x64xf32>, vector<64x64xf32>, vector<8x64xf32> -> vector<8x64xf32>
    %59 = arith.addf %57, %58 : vector<8x64xf32>
    %60 = math.tanh %59 : vector<8x64xf32>
    %c0_16 = arith.constant 0 : index
    %c0_17 = arith.constant 0 : index
    %61 = vector.load %arg4[%c0_16, %c0_17] : memref<64x2xf32, #tpu.memory_space<vmem>>, vector<64x2xf32>
    %cst_18 = arith.constant dense<0.000000e+00> : vector<8x2xf32>
    %62 = tpu.matmul %60, %61, %cst_18 {dimension_numbers = #tpu.dot_dimension_numbers<[1], [0], [0], [1], [0, 0, 1, 1], [], []>} : vector<8x64xf32>, vector<64x2xf32>, vector<8x2xf32> -> vector<8x2xf32>
    %c0_19 = arith.constant 0 : index
    %c0_20 = arith.constant 0 : index
    %63 = vector.load %arg5[%c0_19, %c0_20] : memref<1x2xf32, #tpu.memory_space<vmem>>, vector<1x2xf32>
    %64 = vector.broadcast %63 : vector<1x2xf32> to vector<8x2xf32>
    %65 = arith.addf %62, %64 : vector<8x2xf32>
    %c0_21 = arith.constant 0 : index
    %c0_22 = arith.constant 0 : index
    %66 = vector.load %arg6[%c0_21, %c0_22] : memref<8x2xf32, #tpu.memory_space<vmem>>, vector<8x2xf32>
    tpu.vector_store %arg6[%c0_21, %c0_22], %65 {strides = array<i32>} : memref<8x2xf32, #tpu.memory_space<vmem>>, vector<8x2xf32>,
    return
  }
}

</mosaic_0001>

<llo_original>
// kernel: tpu_custom_call.1
$region0: #{tpu_custom_call.1}
  #allocation0 [shape = 'u32[]', space=smem, size = 0x4, offset = 0x4, fixed_abs, tag = 'smem constant byte address 0x4 - core index']
  #allocation1 [shape = 'u32[144,128]{1,0:T(1,128)}', space=vmem, size = 0x12000, scoped, tag = 'internal scratch']
  %s0 = inlined_call_operand.vmem [shape: f32[8,8,2], index: 0, kind: input, shape index: {}]
  %s1 = inlined_call_operand.vmem [shape: f32[2,64], index: 1, kind: input, shape index: {}]
  %s2 = inlined_call_operand.vmem [shape: f32[64,64], index: 2, kind: input, shape index: {}]
  %s3 = inlined_call_operand.vmem [shape: f32[1,64], index: 3, kind: input, shape index: {}]
  %s4 = inlined_call_operand.vmem [shape: f32[64,2], index: 4, kind: input, shape index: {}]
  %s5 = inlined_call_operand.vmem [shape: f32[1,2], index: 5, kind: input, shape index: {}]
  %s6 = inlined_call_operand.vmem [shape: f32[8,2], index: 6, kind: output, shape index: {}]
  %s7 = sld [smem:[#allocation0]]
  $region34: #{tpu_custom_call.1} parent=0
    _
  %s9 = ssub.s32 1, %s7
  %s10 = scalar_select 0, %s9, %s7
  // Predicated region
  $region2: #{tpu_custom_call.1} parent=0 // pred_check
    _
  $region3: #{tpu_custom_call.1} parent=0 // pred_check_branch
    %12 = sbr.rel (0) target = $region5
  $region4: #{tpu_custom_call.1} parent=0 // pred_region
    _
  $region5: #{tpu_custom_call.1} parent=0 // pred_fallthru
    _
  // Predicated region
  $region6: #{tpu_custom_call.1} parent=0 // pred_check
    _
  $region7: #{tpu_custom_call.1} parent=0 // pred_check_branch
    %14 = sbr.rel (0) target = $region9
  $region8: #{tpu_custom_call.1} parent=0 // pred_region
    _
  $region9: #{tpu_custom_call.1} parent=0 // pred_fallthru
    _
  // Predicated region
  $region10: #{tpu_custom_call.1} parent=0 // pred_check
    _
  $region11: #{tpu_custom_call.1} parent=0 // pred_check_branch
    %16 = sbr.rel (0) target = $region13
  $region12: #{tpu_custom_call.1} parent=0 // pred_region
    _
  $region13: #{tpu_custom_call.1} parent=0 // pred_fallthru
    _
  // Predicated region
  $region14: #{tpu_custom_call.1} parent=0 // pred_check
    _
  $region15: #{tpu_custom_call.1} parent=0 // pred_check_branch
    %18 = sbr.rel (0) target = $region17
  $region16: #{tpu_custom_call.1} parent=0 // pred_region
    _
  $region17: #{tpu_custom_call.1} parent=0 // pred_fallthru
    _
  // Predicated region
  $region18: #{tpu_custom_call.1} parent=0 // pred_check
    _
  $region19: #{tpu_custom_call.1} parent=0 // pred_check_branch
    %20 = sbr.rel (0) target = $region21
  $region20: #{tpu_custom_call.1} parent=0 // pred_region
    _
  $region21: #{tpu_custom_call.1} parent=0 // pred_fallthru
    _
  // Predicated region
  $region22: #{tpu_custom_call.1} parent=0 // pred_check
    _
  $region23: #{tpu_custom_call.1} parent=0 // pred_check_branch
    %22 = sbr.rel (0) target = $region25
  $region24: #{tpu_custom_call.1} parent=0 // pred_region
    _
  $region25: #{tpu_custom_call.1} parent=0 // pred_fallthru
    _
  %v23 = vld [vmem:[%s0] sm:$0xff]
  %v24 = vld [vmem:[%s0 + $0x8] sm:$0xff]
  %v25 = vld [vmem:[%s0 + $0x10] sm:$0xff]
  %v26 = vld [vmem:[%s0 + $0x18] sm:$0xff]
  %v27 = vld [vmem:[%s0 + $0x20] sm:$0xff]
  %v28 = vld [vmem:[%s0 + $0x28] sm:$0xff]
  %v29 = vld [vmem:[%s0 + $0x30] sm:$0xff]
  %v30 = vld [vmem:[%s0 + $0x38] sm:$0xff]
  %v31 = vld [vmem:[%s1] sm:$0x3]
  %v32 = vld [vmem:[%s2] sm:$0xff]
  %v33 = vld [vmem:[%s2 + $0x8] sm:$0xff]
  %v34 = vld [vmem:[%s2 + $0x10] sm:$0xff]
  %v35 = vld [vmem:[%s2 + $0x18] sm:$0xff]
  %v36 = vld [vmem:[%s2 + $0x20] sm:$0xff]
  %v37 = vld [vmem:[%s2 + $0x28] sm:$0xff]
  %v38 = vld [vmem:[%s2 + $0x30] sm:$0xff]
  %v39 = vld [vmem:[%s2 + $0x38] sm:$0xff]
  %41 = vset.pattern.permute.xlu0 0
  %42 = vperm.xlu0 %41, %v23
  %v43 = vpop.permute.xlu0 %42
  %46 = vset.pattern.permute.xlu0 0
  %47 = vperm.xlu0 %46, %v24
  %v48 = vpop.permute.xlu0 %47
  %51 = vset.pattern.permute.xlu0 0
  %52 = vperm.xlu0 %51, %v25
  %v53 = vpop.permute.xlu0 %52
  %56 = vset.pattern.permute.xlu0 0
  %57 = vperm.xlu0 %56, %v26
  %v58 = vpop.permute.xlu0 %57
  %61 = vset.pattern.permute.xlu0 0
  %62 = vperm.xlu0 %61, %v27
  %v63 = vpop.permute.xlu0 %62
  %66 = vset.pattern.permute.xlu0 0
  %67 = vperm.xlu0 %66, %v28
  %v68 = vpop.permute.xlu0 %67
  %71 = vset.pattern.permute.xlu0 0
  %72 = vperm.xlu0 %71, %v29
  %v73 = vpop.permute.xlu0 %72
  %76 = vset.pattern.permute.xlu0 0
  %77 = vperm.xlu0 %76, %v30
  %v78 = vpop.permute.xlu0 %77
  %v80 = vlaneseq
  %v81 = vshrl.u32 %v80, 7
  %v82 = vsub.s32 0, %v81
  %v83 = vrot.slane %v31, %v82
  %v84 = vmul.f32 %v43, %v83
  %v85 = vmul.f32 %v48, %v83
  %v86 = vmul.f32 %v53, %v83
  %v87 = vmul.f32 %v58, %v83
  %v88 = vmul.f32 %v63, %v83
  %v89 = vmul.f32 %v68, %v83
  %v90 = vmul.f32 %v73, %v83
  %v91 = vmul.f32 %v78, %v83
  %v92 = vld [vmem:[%s3] sm:$0x1]
  %v94 = vlaneseq
  %v95 = vshrl.u32 %v94, 7
  %v96 = vsub.s32 0, %v95
  %v97 = vrot.slane %v92, %v96
  %v99 = vadd.f32 %v84, %v97
  %v100 = vadd.f32 %v85, %v97
  %v101 = vadd.f32 %v86, %v97
  %v102 = vadd.f32 %v87, %v97
  %v103 = vadd.f32 %v88, %v97
  %v104 = vadd.f32 %v89, %v97
  %v105 = vadd.f32 %v90, %v97
  %v106 = vadd.f32 %v91, %v97
  %107 = vset.pattern.permute.xlu0 1
  %108 = vperm.xlu0 %107, %v23
  %v109 = vpop.permute.xlu0 %108
  %111 = vset.pattern.permute.xlu0 1
  %112 = vperm.xlu0 %111, %v24
  %v113 = vpop.permute.xlu0 %112
  %115 = vset.pattern.permute.xlu0 1
  %116 = vperm.xlu0 %115, %v25
  %v117 = vpop.permute.xlu0 %116
  %119 = vset.pattern.permute.xlu0 1
  %120 = vperm.xlu0 %119, %v26
  %v121 = vpop.permute.xlu0 %120
  %123 = vset.pattern.permute.xlu0 1
  %124 = vperm.xlu0 %123, %v27
  %v125 = vpop.permute.xlu0 %124
  %127 = vset.pattern.permute.xlu0 1
  %128 = vperm.xlu0 %127, %v28
  %v129 = vpop.permute.xlu0 %128
  %131 = vset.pattern.permute.xlu0 1
  %132 = vperm.xlu0 %131, %v29
  %v133 = vpop.permute.xlu0 %132
  %135 = vset.pattern.permute.xlu0 1
  %136 = vperm.xlu0 %135, %v30
  %v137 = vpop.permute.xlu0 %136
  %v139 = vlaneseq
  %v140 = vshrl.u32 %v139, 7
  %v141 = vsub.s32 1, %v140
  %v142 = vrot.slane %v31, %v141
  %v143 = vmul.f32 %v109, %v142
  %v144 = vmul.f32 %v113, %v142
  %v145 = vmul.f32 %v117, %v142
  %v146 = vmul.f32 %v121, %v142
  %v147 = vmul.f32 %v125, %v142
  %v148 = vmul.f32 %v129, %v142
  %v149 = vmul.f32 %v133, %v142
  %v150 = vmul.f32 %v137, %v142
  %v151 = vadd.f32 %v99, %v143
  %v152 = vadd.f32 %v100, %v144
  %v153 = vadd.f32 %v101, %v145
  %v154 = vadd.f32 %v102, %v146
  %v155 = vadd.f32 %v103, %v147
  %v156 = vadd.f32 %v104, %v148
  %v157 = vadd.f32 %v105, %v149
  %v158 = vadd.f32 %v106, %v150
  %vm159 = vcmask 523264
  %v161 = vsel %vm159, 0.0, 0
  %163 = vmatprep.subr.mxu0 0.0
  %164 = vmatpush1.msra.mxu0 0.0
  %165 = vmatprep.subr.mxu0 0.0
  %166 = vmatpush1.msra.mxu0 0.0
  %167 = vmatprep.subr.mxu0 0.0
  %168 = vmatpush1.msra.mxu0 0.0
  %169 = vmatprep.subr.mxu0 0.0
  %170 = vmatpush1.msra.mxu0 0.0
  %171 = vmatprep.subr.mxu0 0.0
  %172 = vmatpush1.msra.mxu0 0.0
  %173 = vmatprep.subr.mxu0 0.0
  %174 = vmatpush1.msra.mxu0 0.0
  %175 = vmatprep.subr.mxu0 0.0
  %176 = vmatpush1.msra.mxu0 0.0
  %177 = vmatprep.subr.mxu0 0.0
  %178 = vmatpush1.msra.mxu0 0.0
  %179 = vmatprep.subr.mxu0 0.0
  %180 = vmatpush1.msra.mxu0 %v39
  %181 = vmatprep.subr.mxu0 0.0
  %182 = vmatpush1.msra.mxu0 %v38
  %183 = vmatprep.subr.mxu0 0.0
  %184 = vmatpush1.msra.mxu0 %v37
  %185 = vmatprep.subr.mxu0 0.0
  %186 = vmatpush1.msra.mxu0 %v36
  %187 = vmatprep.subr.mxu0 0.0
  %188 = vmatpush1.msra.mxu0 %v35
  %189 = vmatprep.subr.mxu0 0.0
  %190 = vmatpush1.msra.mxu0 %v34
  %191 = vmatprep.subr.mxu0 0.0
  %192 = vmatpush1.msra.mxu0 %v33
  %193 = vmatprep.subr.mxu0 0.0
  %194 = vmatpush1.msra.mxu0 %v32
  %195 = vmatprep.subr.mxu0 0.0
  %196 = vmatpush2.msra.mxu0 0.0
  %197 = vmatprep.subr.mxu0 0.0
  %198 = vmatpush2.msra.mxu0 0.0
  %199 = vmatprep.subr.mxu0 0.0
  %200 = vmatpush2.msra.mxu0 0.0
  %201 = vmatprep.subr.mxu0 0.0
  %202 = vmatpush2.msra.mxu0 0.0
  %203 = vmatprep.subr.mxu0 0.0
  %204 = vmatpush2.msra.mxu0 0.0
  %205 = vmatprep.subr.mxu0 0.0
  %206 = vmatpush2.msra.mxu0 0.0
  %207 = vmatprep.subr.mxu0 0.0
  %208 = vmatpush2.msra.mxu0 0.0
  %209 = vmatprep.subr.mxu0 0.0
  %210 = vmatpush2.msra.mxu0 0.0
  %211 = vmatprep.subr.mxu0 0.0
  %212 = vmatpush2.msra.mxu0 0.0
  %213 = vmatprep.subr.mxu0 0.0
  %214 = vmatpush2.msra.mxu0 0.0
  %215 = vmatprep.subr.mxu0 0.0
  %216 = vmatpush2.msra.mxu0 0.0
  %217 = vmatprep.subr.mxu0 0.0
  %218 = vmatpush2.msra.mxu0 0.0
  %219 = vmatprep.subr.mxu0 0.0
  %220 = vmatpush2.msra.mxu0 0.0
  %221 = vmatprep.subr.mxu0 0.0
  %222 = vmatpush2.msra.mxu0 0.0
  %223 = vmatprep.subr.mxu0 0.0
  %224 = vmatpush2.msra.mxu0 0.0
  %225 = vmatprep.subr.mxu0 0.0
  %226 = vmatpush2.msra.mxu0 0.0
  %227 = vmatprep.mubr.f32.mxu0 0.0
  %228 = vmatmul.mubr.f32.gmra.mxu0 %v161
  %v229 = vpop.f32.mrf.mxu0
  %v230 = vadd.f32 0.0, %v229
  %v231 = vpop.f32.mrf.mxu0
  %232 = vdwg.mxu0
  %v233 = vadd.f32 %v151, %v230
  %v234 = vtanh.pop %v233
  %v236 = vsel %vm159, %v234, 0
  %238 = vmatprep.subr.mxu0 0.0
  %239 = vmatpush1.msra.mxu0 0.0
  %240 = vmatprep.subr.mxu0 0.0
  %241 = vmatpush1.msra.mxu0 0.0
  %242 = vmatprep.subr.mxu0 0.0
  %243 = vmatpush1.msra.mxu0 0.0
  %244 = vmatprep.subr.mxu0 0.0
  %245 = vmatpush1.msra.mxu0 0.0
  %246 = vmatprep.subr.mxu0 0.0
  %247 = vmatpush1.msra.mxu0 0.0
  %248 = vmatprep.subr.mxu0 0.0
  %249 = vmatpush1.msra.mxu0 0.0
  %250 = vmatprep.subr.mxu0 0.0
  %251 = vmatpush1.msra.mxu0 0.0
  %252 = vmatprep.subr.mxu0 0.0
  %253 = vmatpush1.msra.mxu0 0.0
  %254 = vmatprep.subr.mxu0 0.0
  %255 = vmatpush1.msra.mxu0 %v39
  %256 = vmatprep.subr.mxu0 0.0
  %257 = vmatpush1.msra.mxu0 %v38
  %258 = vmatprep.subr.mxu0 0.0
  %259 = vmatpush1.msra.mxu0 %v37
  %260 = vmatprep.subr.mxu0 0.0
  %261 = vmatpush1.msra.mxu0 %v36
  %262 = vmatprep.subr.mxu0 0.0
  %263 = vmatpush1.msra.mxu0 %v35
  %264 = vmatprep.subr.mxu0 0.0
  %265 = vmatpush1.msra.mxu0 %v34
  %266 = vmatprep.subr.mxu0 0.0
  %267 = vmatpush1.msra.mxu0 %v33
  %268 = vmatprep.subr.mxu0 0.0
  %269 = vmatpush1.msra.mxu0 %v32
  %270 = vmatprep.subr.mxu0 0.0
  %271 = vmatpush2.msra.mxu0 0.0
  %272 = vmatprep.subr.mxu0 0.0
  %273 = vmatpush2.msra.mxu0 0.0
  %274 = vmatprep.subr.mxu0 0.0
  %275 = vmatpush2.msra.mxu0 0.0
  %276 = vmatprep.subr.mxu0 0.0
  %277 = vmatpush2.msra.mxu0 0.0
  %278 = vmatprep.subr.mxu0 0.0
  %279 = vmatpush2.msra.mxu0 0.0
  %280 = vmatprep.subr.mxu0 0.0
  %281 = vmatpush2.msra.mxu0 0.0
  %282 = vmatprep.subr.mxu0 0.0
  %283 = vmatpush2.msra.mxu0 0.0
  %284 = vmatprep.subr.mxu0 0.0
  %285 = vmatpush2.msra.mxu0 0.0
  %286 = vmatprep.subr.mxu0 0.0
  %287 = vmatpush2.msra.mxu0 0.0
  %288 = vmatprep.subr.mxu0 0.0
  %289 = vmatpush2.msra.mxu0 0.0
  %290 = vmatprep.subr.mxu0 0.0
  %291 = vmatpush2.msra.mxu0 0.0
  %292 = vmatprep.subr.mxu0 0.0
  %293 = vmatpush2.msra.mxu0 0.0
  %294 = vmatprep.subr.mxu0 0.0
  %295 = vmatpush2.msra.mxu0 0.0
  %296 = vmatprep.subr.mxu0 0.0
  %297 = vmatpush2.msra.mxu0 0.0
  %298 = vmatprep.subr.mxu0 0.0
  %299 = vmatpush2.msra.mxu0 0.0
  %300 = vmatprep.subr.mxu0 0.0
  %301 = vmatpush2.msra.mxu0 0.0
  %302 = vmatprep.mubr.f32.mxu0 0.0
  %303 = vmatmul.mubr.f32.gmra.mxu0 %v236
  %v304 = vpop.f32.mrf.mxu0
  %v305 = vadd.f32 0.0, %v304
  %v306 = vpop.f32.mrf.mxu0
  %307 = vdwg.mxu0
  %v308 = vadd.f32 %v152, %v305
  %v309 = vtanh.pop %v308
  %v311 = vsel %vm159, %v309, 0
  %313 = vmatprep.subr.mxu0 0.0
  %314 = vmatpush1.msra.mxu0 0.0
  %315 = vmatprep.subr.mxu0 0.0
  %316 = vmatpush1.msra.mxu0 0.0
  %317 = vmatprep.subr.mxu0 0.0
  %318 = vmatpush1.msra.mxu0 0.0
  %319 = vmatprep.subr.mxu0 0.0
  %320 = vmatpush1.msra.mxu0 0.0
  %321 = vmatprep.subr.mxu0 0.0
  %322 = vmatpush1.msra.mxu0 0.0
  %323 = vmatprep.subr.mxu0 0.0
  %324 = vmatpush1.msra.mxu0 0.0
  %325 = vmatprep.subr.mxu0 0.0
  %326 = vmatpush1.msra.mxu0 0.0
  %327 = vmatprep.subr.mxu0 0.0
  %328 = vmatpush1.msra.mxu0 0.0
  %329 = vmatprep.subr.mxu0 0.0
  %330 = vmatpush1.msra.mxu0 %v39
  %331 = vmatprep.subr.mxu0 0.0
  %332 = vmatpush1.msra.mxu0 %v38
  %333 = vmatprep.subr.mxu0 0.0
  %334 = vmatpush1.msra.mxu0 %v37
  %335 = vmatprep.subr.mxu0 0.0
  %336 = vmatpush1.msra.mxu0 %v36
  %337 = vmatprep.subr.mxu0 0.0
  %338 = vmatpush1.msra.mxu0 %v35
  %339 = vmatprep.subr.mxu0 0.0
  %340 = vmatpush1.msra.mxu0 %v34
  %341 = vmatprep.subr.mxu0 0.0
  %342 = vmatpush1.msra.mxu0 %v33
  %343 = vmatprep.subr.mxu0 0.0
  %344 = vmatpush1.msra.mxu0 %v32
  %345 = vmatprep.subr.mxu0 0.0
  %346 = vmatpush2.msra.mxu0 0.0
  %347 = vmatprep.subr.mxu0 0.0
  %348 = vmatpush2.msra.mxu0 0.0
  %349 = vmatprep.subr.mxu0 0.0
  %350 = vmatpush2.msra.mxu0 0.0
  %351 = vmatprep.subr.mxu0 0.0
  %352 = vmatpush2.msra.mxu0 0.0
  %353 = vmatprep.subr.mxu0 0.0
  %354 = vmatpush2.msra.mxu0 0.0
  %355 = vmatprep.subr.mxu0 0.0
  %356 = vmatpush2.msra.mxu0 0.0
  %357 = vmatprep.subr.mxu0 0.0
  %358 = vmatpush2.msra.mxu0 0.0
  %359 = vmatprep.subr.mxu0 0.0
  %360 = vmatpush2.msra.mxu0 0.0
  %361 = vmatprep.subr.mxu0 0.0
  %362 = vmatpush2.msra.mxu0 0.0
  %363 = vmatprep.subr.mxu0 0.0
  %364 = vmatpush2.msra.mxu0 0.0
  %365 = vmatprep.subr.mxu0 0.0
  %366 = vmatpush2.msra.mxu0 0.0
  %367 = vmatprep.subr.mxu0 0.0
  %368 = vmatpush2.msra.mxu0 0.0
  %369 = vmatprep.subr.mxu0 0.0
  %370 = vmatpush2.msra.mxu0 0.0
  %371 = vmatprep.subr.mxu0 0.0
  %372 = vmatpush2.msra.mxu0 0.0
  %373 = vmatprep.subr.mxu0 0.0
  %374 = vmatpush2.msra.mxu0 0.0
  %375 = vmatprep.subr.mxu0 0.0
  %376 = vmatpush2.msra.mxu0 0.0
  %377 = vmatprep.mubr.f32.mxu0 0.0
  %378 = vmatmul.mubr.f32.gmra.mxu0 %v311
  %v379 = vpop.f32.mrf.mxu0
  %v380 = vadd.f32 0.0, %v379
  %v381 = vpop.f32.mrf.mxu0
  %382 = vdwg.mxu0
  %v383 = vadd.f32 %v153, %v380
  %v384 = vtanh.pop %v383
  %v386 = vsel %vm159, %v384, 0
  %388 = vmatprep.subr.mxu0 0.0
  %389 = vmatpush1.msra.mxu0 0.0
  %390 = vmatprep.subr.mxu0 0.0
  %391 = vmatpush1.msra.mxu0 0.0
  %392 = vmatprep.subr.mxu0 0.0
  %393 = vmatpush1.msra.mxu0 0.0
  %394 = vmatprep.subr.mxu0 0.0
  %395 = vmatpush1.msra.mxu0 0.0
  %396 = vmatprep.subr.mxu0 0.0
  %397 = vmatpush1.msra.mxu0 0.0
  %398 = vmatprep.subr.mxu0 0.0
  %399 = vmatpush1.msra.mxu0 0.0
  %400 = vmatprep.subr.mxu0 0.0
  %401 = vmatpush1.msra.mxu0 0.0
  %402 = vmatprep.subr.mxu0 0.0
  %403 = vmatpush1.msra.mxu0 0.0
  %404 = vmatprep.subr.mxu0 0.0
  %405 = vmatpush1.msra.mxu0 %v39
  %406 = vmatprep.subr.mxu0 0.0
  %407 = vmatpush1.msra.mxu0 %v38
  %408 = vmatprep.subr.mxu0 0.0
  %409 = vmatpush1.msra.mxu0 %v37
  %410 = vmatprep.subr.mxu0 0.0
  %411 = vmatpush1.msra.mxu0 %v36
  %412 = vmatprep.subr.mxu0 0.0
  %413 = vmatpush1.msra.mxu0 %v35
  %414 = vmatprep.subr.mxu0 0.0
  %415 = vmatpush1.msra.mxu0 %v34
  %416 = vmatprep.subr.mxu0 0.0
  %417 = vmatpush1.msra.mxu0 %v33
  %418 = vmatprep.subr.mxu0 0.0
  %419 = vmatpush1.msra.mxu0 %v32
  %420 = vmatprep.subr.mxu0 0.0
  %421 = vmatpush2.msra.mxu0 0.0
  %422 = vmatprep.subr.mxu0 0.0
  %423 = vmatpush2.msra.mxu0 0.0
  %424 = vmatprep.subr.mxu0 0.0
  %425 = vmatpush2.msra.mxu0 0.0
  %426 = vmatprep.subr.mxu0 0.0
  %427 = vmatpush2.msra.mxu0 0.0
  %428 = vmatprep.subr.mxu0 0.0
  %429 = vmatpush2.msra.mxu0 0.0
  %430 = vmatprep.subr.mxu0 0.0
  %431 = vmatpush2.msra.mxu0 0.0
  %432 = vmatprep.subr.mxu0 0.0
  %433 = vmatpush2.msra.mxu0 0.0
  %434 = vmatprep.subr.mxu0 0.0
  %435 = vmatpush2.msra.mxu0 0.0
  %436 = vmatprep.subr.mxu0 0.0
  %437 = vmatpush2.msra.mxu0 0.0
  %438 = vmatprep.subr.mxu0 0.0
  %439 = vmatpush2.msra.mxu0 0.0
  %440 = vmatprep.subr.mxu0 0.0
  %441 = vmatpush2.msra.mxu0 0.0
  %442 = vmatprep.subr.mxu0 0.0
  %443 = vmatpush2.msra.mxu0 0.0
  %444 = vmatprep.subr.mxu0 0.0
  %445 = vmatpush2.msra.mxu0 0.0
  %446 = vmatprep.subr.mxu0 0.0
  %447 = vmatpush2.msra.mxu0 0.0
  %448 = vmatprep.subr.mxu0 0.0
  %449 = vmatpush2.msra.mxu0 0.0
  %450 = vmatprep.subr.mxu0 0.0
  %451 = vmatpush2.msra.mxu0 0.0
  %452 = vmatprep.mubr.f32.mxu0 0.0
  %453 = vmatmul.mubr.f32.gmra.mxu0 %v386
  %v454 = vpop.f32.mrf.mxu0
  %v455 = vadd.f32 0.0, %v454
  %v456 = vpop.f32.mrf.mxu0
  %457 = vdwg.mxu0
  %v458 = vadd.f32 %v154, %v455
  %v459 = vtanh.pop %v458
  %v461 = vsel %vm159, %v459, 0
  %463 = vmatprep.subr.mxu0 0.0
  %464 = vmatpush1.msra.mxu0 0.0
  %465 = vmatprep.subr.mxu0 0.0
  %466 = vmatpush1.msra.mxu0 0.0
  %467 = vmatprep.subr.mxu0 0.0
  %468 = vmatpush1.msra.mxu0 0.0
  %469 = vmatprep.subr.mxu0 0.0
  %470 = vmatpush1.msra.mxu0 0.0
  %471 = vmatprep.subr.mxu0 0.0
  %472 = vmatpush1.msra.mxu0 0.0
  %473 = vmatprep.subr.mxu0 0.0
  %474 = vmatpush1.msra.mxu0 0.0
  %475 = vmatprep.subr.mxu0 0.0
  %476 = vmatpush1.msra.mxu0 0.0
  %477 = vmatprep.subr.mxu0 0.0
  %478 = vmatpush1.msra.mxu0 0.0
  %479 = vmatprep.subr.mxu0 0.0
  %480 = vmatpush1.msra.mxu0 %v39
  %481 = vmatprep.subr.mxu0 0.0
  %482 = vmatpush1.msra.mxu0 %v38
  %483 = vmatprep.subr.mxu0 0.0
  %484 = vmatpush1.msra.mxu0 %v37
  %485 = vmatprep.subr.mxu0 0.0
  %486 = vmatpush1.msra.mxu0 %v36
  %487 = vmatprep.subr.mxu0 0.0
  %488 = vmatpush1.msra.mxu0 %v35
  %489 = vmatprep.subr.mxu0 0.0
  %490 = vmatpush1.msra.mxu0 %v34
  %491 = vmatprep.subr.mxu0 0.0
  %492 = vmatpush1.msra.mxu0 %v33
  %493 = vmatprep.subr.mxu0 0.0
  %494 = vmatpush1.msra.mxu0 %v32
  %495 = vmatprep.subr.mxu0 0.0
  %496 = vmatpush2.msra.mxu0 0.0
  %497 = vmatprep.subr.mxu0 0.0
  %498 = vmatpush2.msra.mxu0 0.0
  %499 = vmatprep.subr.mxu0 0.0
  %500 = vmatpush2.msra.mxu0 0.0
  %501 = vmatprep.subr.mxu0 0.0
  %502 = vmatpush2.msra.mxu0 0.0
  %503 = vmatprep.subr.mxu0 0.0
  %504 = vmatpush2.msra.mxu0 0.0
  %505 = vmatprep.subr.mxu0 0.0
  %506 = vmatpush2.msra.mxu0 0.0
  %507 = vmatprep.subr.mxu0 0.0
  %508 = vmatpush2.msra.mxu0 0.0
  %509 = vmatprep.subr.mxu0 0.0
  %510 = vmatpush2.msra.mxu0 0.0
  %511 = vmatprep.subr.mxu0 0.0
  %512 = vmatpush2.msra.mxu0 0.0
  %513 = vmatprep.subr.mxu0 0.0
  %514 = vmatpush2.msra.mxu0 0.0
  %515 = vmatprep.subr.mxu0 0.0
  %516 = vmatpush2.msra.mxu0 0.0
  %517 = vmatprep.subr.mxu0 0.0
  %518 = vmatpush2.msra.mxu0 0.0
  %519 = vmatprep.subr.mxu0 0.0
  %520 = vmatpush2.msra.mxu0 0.0
  %521 = vmatprep.subr.mxu0 0.0
  %522 = vmatpush2.msra.mxu0 0.0
  %523 = vmatprep.subr.mxu0 0.0
  %524 = vmatpush2.msra.mxu0 0.0
  %525 = vmatprep.subr.mxu0 0.0
  %526 = vmatpush2.msra.mxu0 0.0
  %527 = vmatprep.mubr.f32.mxu0 0.0
  %528 = vmatmul.mubr.f32.gmra.mxu0 %v461
  %v529 = vpop.f32.mrf.mxu0
  %v530 = vadd.f32 0.0, %v529
  %v531 = vpop.f32.mrf.mxu0
  %532 = vdwg.mxu0
  %v533 = vadd.f32 %v155, %v530
  %v534 = vtanh.pop %v533
  %v536 = vsel %vm159, %v534, 0
  %538 = vmatprep.subr.mxu0 0.0
  %539 = vmatpush1.msra.mxu0 0.0
  %540 = vmatprep.subr.mxu0 0.0
  %541 = vmatpush1.msra.mxu0 0.0
  %542 = vmatprep.subr.mxu0 0.0
  %543 = vmatpush1.msra.mxu0 0.0
  %544 = vmatprep.subr.mxu0 0.0
  %545 = vmatpush1.msra.mxu0 0.0
  %546 = vmatprep.subr.mxu0 0.0
  %547 = vmatpush1.msra.mxu0 0.0
  %548 = vmatprep.subr.mxu0 0.0
  %549 = vmatpush1.msra.mxu0 0.0
  %550 = vmatprep.subr.mxu0 0.0
  %551 = vmatpush1.msra.mxu0 0.0
  %552 = vmatprep.subr.mxu0 0.0
  %553 = vmatpush1.msra.mxu0 0.0
  %554 = vmatprep.subr.mxu0 0.0
  %555 = vmatpush1.msra.mxu0 %v39
  %556 = vmatprep.subr.mxu0 0.0
  %557 = vmatpush1.msra.mxu0 %v38
  %558 = vmatprep.subr.mxu0 0.0
  %559 = vmatpush1.msra.mxu0 %v37
  %560 = vmatprep.subr.mxu0 0.0
  %561 = vmatpush1.msra.mxu0 %v36
  %562 = vmatprep.subr.mxu0 0.0
  %563 = vmatpush1.msra.mxu0 %v35
  %564 = vmatprep.subr.mxu0 0.0
  %565 = vmatpush1.msra.mxu0 %v34
  %566 = vmatprep.subr.mxu0 0.0
  %567 = vmatpush1.msra.mxu0 %v33
  %568 = vmatprep.subr.mxu0 0.0
  %569 = vmatpush1.msra.mxu0 %v32
  %570 = vmatprep.subr.mxu0 0.0
  %571 = vmatpush2.msra.mxu0 0.0
  %572 = vmatprep.subr.mxu0 0.0
  %573 = vmatpush2.msra.mxu0 0.0
  %574 = vmatprep.subr.mxu0 0.0
  %575 = vmatpush2.msra.mxu0 0.0
  %576 = vmatprep.subr.mxu0 0.0
  %577 = vmatpush2.msra.mxu0 0.0
  %578 = vmatprep.subr.mxu0 0.0
  %579 = vmatpush2.msra.mxu0 0.0
  %580 = vmatprep.subr.mxu0 0.0
  %581 = vmatpush2.msra.mxu0 0.0
  %582 = vmatprep.subr.mxu0 0.0
  %583 = vmatpush2.msra.mxu0 0.0
  %584 = vmatprep.subr.mxu0 0.0
  %585 = vmatpush2.msra.mxu0 0.0
  %586 = vmatprep.subr.mxu0 0.0
  %587 = vmatpush2.msra.mxu0 0.0
  %588 = vmatprep.subr.mxu0 0.0
  %589 = vmatpush2.msra.mxu0 0.0
  %590 = vmatprep.subr.mxu0 0.0
  %591 = vmatpush2.msra.mxu0 0.0
  %592 = vmatprep.subr.mxu0 0.0
  %593 = vmatpush2.msra.mxu0 0.0
  %594 = vmatprep.subr.mxu0 0.0
  %595 = vmatpush2.msra.mxu0 0.0
  %596 = vmatprep.subr.mxu0 0.0
  %597 = vmatpush2.msra.mxu0 0.0
  %598 = vmatprep.subr.mxu0 0.0
  %599 = vmatpush2.msra.mxu0 0.0
  %600 = vmatprep.subr.mxu0 0.0
  %601 = vmatpush2.msra.mxu0 0.0
  %602 = vmatprep.mubr.f32.mxu0 0.0
  %603 = vmatmul.mubr.f32.gmra.mxu0 %v536
  %v604 = vpop.f32.mrf.mxu0
  %v605 = vadd.f32 0.0, %v604
  %v606 = vpop.f32.mrf.mxu0
  %607 = vdwg.mxu0
  %v608 = vadd.f32 %v156, %v605
  %v609 = vtanh.pop %v608
  %v611 = vsel %vm159, %v609, 0
  %613 = vmatprep.subr.mxu0 0.0
  %614 = vmatpush1.msra.mxu0 0.0
  %615 = vmatprep.subr.mxu0 0.0
  %616 = vmatpush1.msra.mxu0 0.0
  %617 = vmatprep.subr.mxu0 0.0
  %618 = vmatpush1.msra.mxu0 0.0
  %619 = vmatprep.subr.mxu0 0.0
  %620 = vmatpush1.msra.mxu0 0.0
  %621 = vmatprep.subr.mxu0 0.0
  %622 = vmatpush1.msra.mxu0 0.0
  %623 = vmatprep.subr.mxu0 0.0
  %624 = vmatpush1.msra.mxu0 0.0
  %625 = vmatprep.subr.mxu0 0.0
  %626 = vmatpush1.msra.mxu0 0.0
  %627 = vmatprep.subr.mxu0 0.0
  %628 = vmatpush1.msra.mxu0 0.0
  %629 = vmatprep.subr.mxu0 0.0
  %630 = vmatpush1.msra.mxu0 %v39
  %631 = vmatprep.subr.mxu0 0.0
  %632 = vmatpush1.msra.mxu0 %v38
  %633 = vmatprep.subr.mxu0 0.0
  %634 = vmatpush1.msra.mxu0 %v37
  %635 = vmatprep.subr.mxu0 0.0
  %636 = vmatpush1.msra.mxu0 %v36
  %637 = vmatprep.subr.mxu0 0.0
  %638 = vmatpush1.msra.mxu0 %v35
  %639 = vmatprep.subr.mxu0 0.0
  %640 = vmatpush1.msra.mxu0 %v34
  %641 = vmatprep.subr.mxu0 0.0
  %642 = vmatpush1.msra.mxu0 %v33
  %643 = vmatprep.subr.mxu0 0.0
  %644 = vmatpush1.msra.mxu0 %v32
  %645 = vmatprep.subr.mxu0 0.0
  %646 = vmatpush2.msra.mxu0 0.0
  %647 = vmatprep.subr.mxu0 0.0
  %648 = vmatpush2.msra.mxu0 0.0
  %649 = vmatprep.subr.mxu0 0.0
  %650 = vmatpush2.msra.mxu0 0.0
  %651 = vmatprep.subr.mxu0 0.0
  %652 = vmatpush2.msra.mxu0 0.0
  %653 = vmatprep.subr.mxu0 0.0
  %654 = vmatpush2.msra.mxu0 0.0
  %655 = vmatprep.subr.mxu0 0.0
  %656 = vmatpush2.msra.mxu0 0.0
  %657 = vmatprep.subr.mxu0 0.0
  %658 = vmatpush2.msra.mxu0 0.0
  %659 = vmatprep.subr.mxu0 0.0
  %660 = vmatpush2.msra.mxu0 0.0
  %661 = vmatprep.subr.mxu0 0.0
  %662 = vmatpush2.msra.mxu0 0.0
  %663 = vmatprep.subr.mxu0 0.0
  %664 = vmatpush2.msra.mxu0 0.0
  %665 = vmatprep.subr.mxu0 0.0
  %666 = vmatpush2.msra.mxu0 0.0
  %667 = vmatprep.subr.mxu0 0.0
  %668 = vmatpush2.msra.mxu0 0.0
  %669 = vmatprep.subr.mxu0 0.0
  %670 = vmatpush2.msra.mxu0 0.0
  %671 = vmatprep.subr.mxu0 0.0
  %672 = vmatpush2.msra.mxu0 0.0
  %673 = vmatprep.subr.mxu0 0.0
  %674 = vmatpush2.msra.mxu0 0.0
  %675 = vmatprep.subr.mxu0 0.0
  %676 = vmatpush2.msra.mxu0 0.0
  %677 = vmatprep.mubr.f32.mxu0 0.0
  %678 = vmatmul.mubr.f32.gmra.mxu0 %v611
  %v679 = vpop.f32.mrf.mxu0
  %v680 = vadd.f32 0.0, %v679
  %v681 = vpop.f32.mrf.mxu0
  %682 = vdwg.mxu0
  %v683 = vadd.f32 %v157, %v680
  %v684 = vtanh.pop %v683
  %v686 = vsel %vm159, %v684, 0
  %688 = vmatprep.subr.mxu0 0.0
  %689 = vmatpush1.msra.mxu0 0.0
  %690 = vmatprep.subr.mxu0 0.0
  %691 = vmatpush1.msra.mxu0 0.0
  %692 = vmatprep.subr.mxu0 0.0
  %693 = vmatpush1.msra.mxu0 0.0
  %694 = vmatprep.subr.mxu0 0.0
  %695 = vmatpush1.msra.mxu0 0.0
  %696 = vmatprep.subr.mxu0 0.0
  %697 = vmatpush1.msra.mxu0 0.0
  %698 = vmatprep.subr.mxu0 0.0
  %699 = vmatpush1.msra.mxu0 0.0
  %700 = vmatprep.subr.mxu0 0.0
  %701 = vmatpush1.msra.mxu0 0.0
  %702 = vmatprep.subr.mxu0 0.0
  %703 = vmatpush1.msra.mxu0 0.0
  %704 = vmatprep.subr.mxu0 0.0
  %705 = vmatpush1.msra.mxu0 %v39
  %706 = vmatprep.subr.mxu0 0.0
  %707 = vmatpush1.msra.mxu0 %v38
  %708 = vmatprep.subr.mxu0 0.0
  %709 = vmatpush1.msra.mxu0 %v37
  %710 = vmatprep.subr.mxu0 0.0
  %711 = vmatpush1.msra.mxu0 %v36
  %712 = vmatprep.subr.mxu0 0.0
  %713 = vmatpush1.msra.mxu0 %v35
  %714 = vmatprep.subr.mxu0 0.0
  %715 = vmatpush1.msra.mxu0 %v34
  %716 = vmatprep.subr.mxu0 0.0
  %717 = vmatpush1.msra.mxu0 %v33
  %718 = vmatprep.subr.mxu0 0.0
  %719 = vmatpush1.msra.mxu0 %v32
  %720 = vmatprep.subr.mxu0 0.0
  %721 = vmatpush2.msra.mxu0 0.0
  %722 = vmatprep.subr.mxu0 0.0
  %723 = vmatpush2.msra.mxu0 0.0
  %724 = vmatprep.subr.mxu0 0.0
  %725 = vmatpush2.msra.mxu0 0.0
  %726 = vmatprep.subr.mxu0 0.0
  %727 = vmatpush2.msra.mxu0 0.0
  %728 = vmatprep.subr.mxu0 0.0
  %729 = vmatpush2.msra.mxu0 0.0
  %730 = vmatprep.subr.mxu0 0.0
  %731 = vmatpush2.msra.mxu0 0.0
  %732 = vmatprep.subr.mxu0 0.0
  %733 = vmatpush2.msra.mxu0 0.0
  %734 = vmatprep.subr.mxu0 0.0
  %735 = vmatpush2.msra.mxu0 0.0
  %736 = vmatprep.subr.mxu0 0.0
  %737 = vmatpush2.msra.mxu0 0.0
  %738 = vmatprep.subr.mxu0 0.0
  %739 = vmatpush2.msra.mxu0 0.0
  %740 = vmatprep.subr.mxu0 0.0
  %741 = vmatpush2.msra.mxu0 0.0
  %742 = vmatprep.subr.mxu0 0.0
  %743 = vmatpush2.msra.mxu0 0.0
  %744 = vmatprep.subr.mxu0 0.0
  %745 = vmatpush2.msra.mxu0 0.0
  %746 = vmatprep.subr.mxu0 0.0
  %747 = vmatpush2.msra.mxu0 0.0
  %748 = vmatprep.subr.mxu0 0.0
  %749 = vmatpush2.msra.mxu0 0.0
  %750 = vmatprep.subr.mxu0 0.0
  %751 = vmatpush2.msra.mxu0 0.0
  %752 = vmatprep.mubr.f32.mxu0 0.0
  %753 = vmatmul.mubr.f32.gmra.mxu0 %v686
  %v754 = vpop.f32.mrf.mxu0
  %v755 = vadd.f32 0.0, %v754
  %v756 = vpop.f32.mrf.mxu0
  %757 = vdwg.mxu0
  %v758 = vadd.f32 %v158, %v755
  %v759 = vtanh.pop %v758
  %v760 = vld [vmem:[%s4] sm:$0xff]
  %v761 = vld [vmem:[%s4 + $0x8] sm:$0xff]
  %v762 = vld [vmem:[%s4 + $0x10] sm:$0xff]
  %v763 = vld [vmem:[%s4 + $0x18] sm:$0xff]
  %v764 = vld [vmem:[%s4 + $0x20] sm:$0xff]
  %v765 = vld [vmem:[%s4 + $0x28] sm:$0xff]
  %v766 = vld [vmem:[%s4 + $0x30] sm:$0xff]
  %v767 = vld [vmem:[%s4 + $0x38] sm:$0xff]
  %v768 = vld [vmem:[%s5] sm:$0x1]
  %v770 = vlaneseq
  %v771 = vshrl.u32 %v770, 7
  %v772 = vsub.s32 0, %v771
  %v773 = vrot.slane %v768, %v772
  %v776 = vsel %vm159, %v759, 0
  %778 = vmatprep.subr.mxu0 0.0
  %779 = vmatpush1.msra.mxu0 0.0
  %780 = vmatprep.subr.mxu0 0.0
  %781 = vmatpush1.msra.mxu0 0.0
  %782 = vmatprep.subr.mxu0 0.0
  %783 = vmatpush1.msra.mxu0 0.0
  %784 = vmatprep.subr.mxu0 0.0
  %785 = vmatpush1.msra.mxu0 0.0
  %786 = vmatprep.subr.mxu0 0.0
  %787 = vmatpush1.msra.mxu0 0.0
  %788 = vmatprep.subr.mxu0 0.0
  %789 = vmatpush1.msra.mxu0 0.0
  %790 = vmatprep.subr.mxu0 0.0
  %791 = vmatpush1.msra.mxu0 0.0
  %792 = vmatprep.subr.mxu0 0.0
  %793 = vmatpush1.msra.mxu0 0.0
  %794 = vmatprep.subr.mxu0 0.0
  %795 = vmatpush1.msra.mxu0 %v767
  %796 = vmatprep.subr.mxu0 0.0
  %797 = vmatpush1.msra.mxu0 %v766
  %798 = vmatprep.subr.mxu0 0.0
  %799 = vmatpush1.msra.mxu0 %v765
  %800 = vmatprep.subr.mxu0 0.0
  %801 = vmatpush1.msra.mxu0 %v764
  %802 = vmatprep.subr.mxu0 0.0
  %803 = vmatpush1.msra.mxu0 %v763
  %804 = vmatprep.subr.mxu0 0.0
  %805 = vmatpush1.msra.mxu0 %v762
  %806 = vmatprep.subr.mxu0 0.0
  %807 = vmatpush1.msra.mxu0 %v761
  %808 = vmatprep.subr.mxu0 0.0
  %809 = vmatpush1.msra.mxu0 %v760
  %810 = vmatprep.subr.mxu0 0.0
  %811 = vmatpush2.msra.mxu0 0.0
  %812 = vmatprep.subr.mxu0 0.0
  %813 = vmatpush2.msra.mxu0 0.0
  %814 = vmatprep.subr.mxu0 0.0
  %815 = vmatpush2.msra.mxu0 0.0
  %816 = vmatprep.subr.mxu0 0.0
  %817 = vmatpush2.msra.mxu0 0.0
  %818 = vmatprep.subr.mxu0 0.0
  %819 = vmatpush2.msra.mxu0 0.0
  %820 = vmatprep.subr.mxu0 0.0
  %821 = vmatpush2.msra.mxu0 0.0
  %822 = vmatprep.subr.mxu0 0.0
  %823 = vmatpush2.msra.mxu0 0.0
  %824 = vmatprep.subr.mxu0 0.0
  %825 = vmatpush2.msra.mxu0 0.0
  %826 = vmatprep.subr.mxu0 0.0
  %827 = vmatpush2.msra.mxu0 0.0
  %828 = vmatprep.subr.mxu0 0.0
  %829 = vmatpush2.msra.mxu0 0.0
  %830 = vmatprep.subr.mxu0 0.0
  %831 = vmatpush2.msra.mxu0 0.0
  %832 = vmatprep.subr.mxu0 0.0
  %833 = vmatpush2.msra.mxu0 0.0
  %834 = vmatprep.subr.mxu0 0.0
  %835 = vmatpush2.msra.mxu0 0.0
  %836 = vmatprep.subr.mxu0 0.0
  %837 = vmatpush2.msra.mxu0 0.0
  %838 = vmatprep.subr.mxu0 0.0
  %839 = vmatpush2.msra.mxu0 0.0
  %840 = vmatprep.subr.mxu0 0.0
  %841 = vmatpush2.msra.mxu0 0.0
  %842 = vmatprep.mubr.f32.mxu0 0.0
  %843 = vmatmul.mubr.f32.gmra.mxu0 %v776
  %v844 = vpop.f32.mrf.mxu0
  %v845 = vadd.f32 %v773, %v844
  %v846 = vpop.f32.mrf.mxu0
  %847 = vdwg.mxu0
  %vm848 = vcmask 15360
  %849 = vst.msk [vmem:[%s6] sm:$0xff] %vm848, %v845
  // Predicated region
  $region26: #{tpu_custom_call.1} parent=0 // pred_check
    _
  $region27: #{tpu_custom_call.1} parent=0 // pred_check_branch
    %851 = sbr.rel (0) target = $region29
  $region28: #{tpu_custom_call.1} parent=0 // pred_region
    _
  $region29: #{tpu_custom_call.1} parent=0 // pred_fallthru
    _
  // Predicated region
  $region30: #{tpu_custom_call.1} parent=0 // pred_check
    _
  $region31: #{tpu_custom_call.1} parent=0 // pred_check_branch
    %853 = sbr.rel (0) target = $region33
  $region32: #{tpu_custom_call.1} parent=0 // pred_region
    _
  $region33: #{tpu_custom_call.1} parent=0 // pred_fallthru
    _

</llo_original>
